<compile_context>
chip_gen: v5e
topology: v5e:2x2
jax: 0.10.0
libtpu: 0.0.40
codegen_flags: <defaults>
</compile_context>

<pallas_src>
import jax
import jax.numpy as jnp
from jax.experimental import pallas as pl
from jax.experimental.pallas import tpu as pltpu


# ----------------------------------------------------------------------------
# helpers
# ----------------------------------------------------------------------------
def _round_up(x, m):
    return (x + m - 1) // m * m


def _pick_tile(dim, unit, single_cap, tile):
    """Return (tile_size, padded_dim). Single tile if it fits under cap."""
    r = _round_up(dim, unit)
    if r <= single_cap:
        return r, r
    return tile, _round_up(dim, tile)


# ----------------------------------------------------------------------------
# Pallas matmul kernels with fused bias / residual / ReLU epilogue
# ----------------------------------------------------------------------------
def _make_matmul_kernel_single_k(apply_relu, has_residual):
    """Whole reduction in one tile: no accumulator scratch, direct store."""
    if has_residual:
        def kernel(x_ref, w_ref, b_ref, r_ref, o_ref):
            acc = jnp.dot(x_ref[...], w_ref[...],
                          preferred_element_type=jnp.float32)
            out = acc + b_ref[...] + r_ref[...].astype(jnp.float32)
            if apply_relu:
                out = jnp.maximum(out, 0.0)
            o_ref[...] = out.astype(o_ref.dtype)
    else:
        def kernel(x_ref, w_ref, b_ref, o_ref):
            acc = jnp.dot(x_ref[...], w_ref[...],
                          preferred_element_type=jnp.float32)
            out = acc + b_ref[...]
            if apply_relu:
                out = jnp.maximum(out, 0.0)
            o_ref[...] = out.astype(o_ref.dtype)
    return kernel


def _make_matmul_kernel_multi_k(apply_relu, has_residual):
    """Reduction split over grid axis 2: f32 accumulator scratch."""
    if has_residual:
        def kernel(x_ref, w_ref, b_ref, r_ref, o_ref, acc_ref):
            @pl.when(pl.program_id(2) == 0)
            def _():
                acc_ref[...] = jnp.zeros_like(acc_ref)

            acc_ref[...] += jnp.dot(x_ref[...], w_ref[...],
                                    preferred_element_type=jnp.float32)

            @pl.when(pl.program_id(2) == pl.num_programs(2) - 1)
            def _():
                out = acc_ref[...] + b_ref[...] + r_ref[...].astype(jnp.float32)
                if apply_relu:
                    out = jnp.maximum(out, 0.0)
                o_ref[...] = out.astype(o_ref.dtype)
    else:
        def kernel(x_ref, w_ref, b_ref, o_ref, acc_ref):
            @pl.when(pl.program_id(2) == 0)
            def _():
                acc_ref[...] = jnp.zeros_like(acc_ref)

            acc_ref[...] += jnp.dot(x_ref[...], w_ref[...],
                                    preferred_element_type=jnp.float32)

            @pl.when(pl.program_id(2) == pl.num_programs(2) - 1)
            def _():
                out = acc_ref[...] + b_ref[...]
                if apply_relu:
                    out = jnp.maximum(out, 0.0)
                o_ref[...] = out.astype(o_ref.dtype)
    return kernel


def matmul_affine(x, w, bias=None, residual=None, relu=False):
    """y = relu?( (x @ w) + bias [+ residual] ), bf16 operands, f32 epilogue."""
    M, K = x.shape
    K2, N = w.shape
    assert K == K2
    if bias is None:
        bias = jnp.zeros((N,), jnp.float32)

    tm, Mp = _pick_tile(M, 16, 512, 512)      # full-M single tile when small
    tk, Kp = _pick_tile(K, 128, 2304, 1024)   # big reduction tiles
    tn, Np = _pick_tile(N, 128, 512, 512)

    xp = jnp.pad(x.astype(jnp.bfloat16), ((0, Mp - M), (0, Kp - K)))
    wp = jnp.pad(w.astype(jnp.bfloat16), ((0, Kp - K), (0, Np - N)))
    bp = jnp.pad(bias.astype(jnp.float32), (0, Np - N)).reshape(1, Np)

    has_res = residual is not None
    single_k = (Kp // tk) == 1

    inputs = [xp, wp, bp]
    if has_res:
        rp = jnp.pad(residual.astype(jnp.bfloat16),
                     ((0, Mp - M), (0, Np - N)))
        inputs.append(rp)

    if single_k:
        in_specs = [
            pl.BlockSpec((tm, tk), lambda i, j: (i, 0)),
            pl.BlockSpec((tk, tn), lambda i, j: (0, j)),
            pl.BlockSpec((1, tn), lambda i, j: (0, j)),
        ]
        if has_res:
            in_specs.append(pl.BlockSpec((tm, tn), lambda i, j: (i, j)))
        grid = (Mp // tm, Np // tn)
        out = pl.pallas_call(
            _make_matmul_kernel_single_k(relu, has_res),
            out_shape=jax.ShapeDtypeStruct((Mp, Np), jnp.float32),
            grid_spec=pltpu.PrefetchScalarGridSpec(
                num_scalar_prefetch=0,
                grid=grid,
                in_specs=in_specs,
                out_specs=pl.BlockSpec((tm, tn), lambda i, j: (i, j)),
            ),
            compiler_params=pltpu.CompilerParams(
                dimension_semantics=("parallel", "parallel")),
        )(*inputs)
    else:
        in_specs = [
            pl.BlockSpec((tm, tk), lambda i, j, k: (i, k)),
            pl.BlockSpec((tk, tn), lambda i, j, k: (k, j)),
            pl.BlockSpec((1, tn), lambda i, j, k: (0, j)),
        ]
        if has_res:
            in_specs.append(pl.BlockSpec((tm, tn), lambda i, j, k: (i, j)))
        grid = (Mp // tm, Np // tn, Kp // tk)
        out = pl.pallas_call(
            _make_matmul_kernel_multi_k(relu, has_res),
            out_shape=jax.ShapeDtypeStruct((Mp, Np), jnp.float32),
            grid_spec=pltpu.PrefetchScalarGridSpec(
                num_scalar_prefetch=0,
                grid=grid,
                in_specs=in_specs,
                out_specs=pl.BlockSpec((tm, tn), lambda i, j, k: (i, j)),
                scratch_shapes=[pltpu.VMEM((tm, tn), jnp.float32)],
            ),
            compiler_params=pltpu.CompilerParams(
                dimension_semantics=("parallel", "parallel", "arbitrary")),
        )(*inputs)
    return out[:M, :N]


# ----------------------------------------------------------------------------
# Pooling kernels
# ----------------------------------------------------------------------------
def _maxpool_kernel(x_ref, o_ref):
    # x_ref: (taps, tr, L) -> max over window-tap axis 0
    acc = x_ref[0]
    for i in range(1, x_ref.shape[0]):
        acc = jnp.maximum(acc, x_ref[i])
    o_ref[...] = acc


def _meanpool_kernel(x_ref, o_ref):
    # x_ref: (S, B, C) -> mean over spatial axis 0
    acc = x_ref[0].astype(jnp.float32)
    for i in range(1, x_ref.shape[0]):
        acc = acc + x_ref[i]
    o_ref[...] = acc / float(x_ref.shape[0])


def maxpool3d(x, k=3, stride=2, pad=1):
    """MaxPool3d with -inf padding (PyTorch semantics)."""
    B, D, H, W, C = x.shape
    Do = (D + 2 * pad - k) // stride + 1
    Ho = (H + 2 * pad - k) // stride + 1
    Wo = (W + 2 * pad - k) // stride + 1
    xp = jnp.pad(x, ((0, 0), (pad, pad), (pad, pad), (pad, pad), (0, 0)),
                 constant_values=-jnp.inf)
    cols = []
    for kd in range(k):
        for kh in range(k):
            for kw in range(k):
                cols.append(xp[:, kd:kd + Do * stride:stride,
                               kh:kh + Ho * stride:stride,
                               kw:kw + Wo * stride:stride, :])
    taps = k * k * k
    R = B * Do * Ho
    L = Wo * C                                    # lane-dense trailing dim
    stacked = jnp.stack(cols, axis=0).reshape(taps, R, L)

    # Grid over rows so the VMEM block stays bounded (v7x 64 MiB safe).
    tr_cap = max(8, ((2 << 20) // (taps * L * 4)) // 8 * 8)
    tr = min(_round_up(R, 8), tr_cap)
    Rp = _round_up(R, tr)
    stacked = jnp.pad(stacked, ((0, 0), (0, Rp - R), (0, 0)),
                      constant_values=-jnp.inf)

    out = pl.pallas_call(
        _maxpool_kernel,
        out_shape=jax.ShapeDtypeStruct((Rp, L), jnp.float32),
        grid_spec=pltpu.PrefetchScalarGridSpec(
            num_scalar_prefetch=0,
            grid=(Rp // tr,),
            in_specs=[pl.BlockSpec((taps, tr, L), lambda i: (0, i, 0))],
            out_specs=pl.BlockSpec((tr, L), lambda i: (i, 0)),
        ),
        compiler_params=pltpu.CompilerParams(
            dimension_semantics=("parallel",)),
    )(stacked)
    return out[:R].reshape(B, Do, Ho, Wo, C)


def global_avgpool(x):
    """AdaptiveAvgPool3d(1) -> (B, C)."""
    B, D, H, W, C = x.shape
    stacked = jnp.transpose(x.reshape(B, D * H * W, C), (1, 0, 2))  # (S, B, C)
    return pl.pallas_call(
        _meanpool_kernel,
        out_shape=jax.ShapeDtypeStruct((B, C), jnp.float32),
    )(stacked)


# ----------------------------------------------------------------------------
# Conv3D via im2col + Pallas matmul (BN folded into weights)
# ----------------------------------------------------------------------------
def _im2col_3d(x, k, stride, pad):
    """x: (B, D, H, W, C) -> patches (B*Do*Ho*Wo, k^3*C)."""
    B, D, H, W, C = x.shape
    Do = (D + 2 * pad - k) // stride + 1
    Ho = (H + 2 * pad - k) // stride + 1
    Wo = (W + 2 * pad - k) // stride + 1
    if k == 1 and pad == 0:
        patches = x[:, ::stride, ::stride, ::stride, :].reshape(
            B * Do * Ho * Wo, C)
    else:
        xp = jnp.pad(x, ((0, 0), (pad, pad), (pad, pad), (pad, pad), (0, 0)))
        cols = []
        for kd in range(k):
            for kh in range(k):
                for kw in range(k):
                    cols.append(xp[:, kd:kd + Do * stride:stride,
                                   kh:kh + Ho * stride:stride,
                                   kw:kw + Wo * stride:stride, :])
        patches = jnp.stack(cols, axis=4).reshape(
            B * Do * Ho * Wo, k * k * k * C)
    return patches, (B, Do, Ho, Wo)


def conv_bn(x, w, bn, stride=1, pad=0, relu=False, residual=None):
    """Conv3d (no bias) + BatchNorm3d (eval) [+ residual] [+ ReLU]."""
    k = w.shape[0]
    cout = w.shape[-1]
    patches, (B, Do, Ho, Wo) = _im2col_3d(x, k, stride, pad)
    gamma, beta, mean, var = bn
    scale = gamma / jnp.sqrt(var + 1e-5)
    bias = beta - mean * scale
    # Fold BN scale into the weight columns -> epilogue is just +bias(+res).
    w2d = w.reshape(-1, cout) * scale[None, :]
    res2d = None if residual is None else residual.reshape(-1, cout)
    y = matmul_affine(patches, w2d, bias=bias, residual=res2d, relu=relu)
    return y.reshape(B, Do, Ho, Wo, cout)


# ----------------------------------------------------------------------------
# Fused 3-layer seq MLP (all weights VMEM-resident, one Pallas call)
# ----------------------------------------------------------------------------
def _seq_mlp_kernel(x_ref, w0_ref, w1_ref, b1_ref, w2_ref, b2_ref, o_ref):
    h = jnp.maximum(jnp.dot(x_ref[...], w0_ref[...],
                            preferred_element_type=jnp.float32), 0.0)
    h = jnp.maximum(jnp.dot(h, w1_ref[...],
                            preferred_element_type=jnp.float32)
                    + b1_ref[...], 0.0)
    o_ref[...] = (jnp.dot(h, w2_ref[...],
                          preferred_element_type=jnp.float32)
                  + b2_ref[...]).astype(o_ref.dtype)


def seq_forward(seq, p):
    # SEQ(seq_type='mlp'): Linear(50,50,no bias)+ReLU, Linear(50,1024)+ReLU,
    # Linear(1024,256)
    x = seq.reshape(seq.shape[0], -1).astype(jnp.float32)   # squeeze(1) -> (B,50)
    B, K0 = x.shape
    H1 = p['w1'].shape[0]   # 1024
    H2 = p['w2'].shape[0]   # 256
    Bp = _round_up(max(B, 8), 8)
    K0p = _round_up(K0, 128)

    xp = jnp.pad(x, ((0, Bp - B), (0, K0p - K0)))
    w0 = jnp.pad(p['w0'].T.astype(jnp.float32),
                 ((0, K0p - K0), (0, K0p - K0)))
    w1 = jnp.pad(p['w1'].T.astype(jnp.float32), ((0, K0p - K0), (0, 0)))
    b1 = p['b1'].astype(jnp.float32).reshape(1, H1)
    w2 = p['w2'].T.astype(jnp.float32)
    b2 = p['b2'].astype(jnp.float32).reshape(1, H2)

    out = pl.pallas_call(
        _seq_mlp_kernel,
        out_shape=jax.ShapeDtypeStruct((Bp, H2), jnp.float32),
    )(xp, w0, w1, b1, w2, b2)
    return out[:B]


# ----------------------------------------------------------------------------
# Model: ResNet3D-26 (Bottleneck [1,2,4,1]) + SEQ(mlp) + fusion linear
# ----------------------------------------------------------------------------
def bottleneck_forward(x, p):
    stride = p['stride']
    if 'down_w' in p:
        shortcut = conv_bn(x, p['down_w'], p['down_bn'],
                           stride=stride, pad=0, relu=False)
    else:
        shortcut = x
    out = conv_bn(x, p['w1'], p['bn1'], stride=1, pad=0, relu=True)
    out = conv_bn(out, p['w2'], p['bn2'], stride=stride, pad=1, relu=True)
    # bn3 + residual add + relu fused into the conv3 matmul epilogue
    out = conv_bn(out, p['w3'], p['bn3'], stride=1, pad=0, relu=True,
                  residual=shortcut)
    return out


def resnet_forward(vox_ndhwc, p):
    out = conv_bn(vox_ndhwc, p['conv1_w'], p['bn1'], stride=2, pad=3, relu=True)
    out = maxpool3d(out, k=3, stride=2, pad=1)
    for blk in p['blocks']:
        out = bottleneck_forward(out, blk)
    out = global_avgpool(out)          # (B, 2048)
    return out


def mmf_peptide_forward(vox_ncdhw, seq, params):
    vox = jnp.transpose(vox_ncdhw, (0, 2, 3, 4, 1))            # NCDHW -> NDHWC
    seq_emb = seq_forward(seq, params['seq'])                  # (B, 256)
    vox_emb = resnet_forward(vox, params['resnet'])            # (B, 2048)
    fused = jnp.concatenate([seq_emb, vox_emb], axis=1)        # (B, 2304)
    pred = matmul_affine(fused, params['fusion_w'].T, bias=params['fusion_b'])
    return pred                                                # (B, classes)


# ----------------------------------------------------------------------------
# Deterministic parameter initialization (shapes from the PyTorch __init__)
# ----------------------------------------------------------------------------
def init_params(key, classes=6):
    keys = iter(jax.random.split(key, 256))

    def conv_w(cin, cout, k):
        fan_out = k * k * k * cout
        return (jax.random.normal(next(keys), (k, k, k, cin, cout), jnp.float32)
                * jnp.sqrt(2.0 / fan_out))

    def bn(c):
        # (gamma, beta, running_mean, running_var) — PyTorch init, eval mode
        return (jnp.ones((c,), jnp.float32), jnp.zeros((c,), jnp.float32),
                jnp.zeros((c,), jnp.float32), jnp.ones((c,), jnp.float32))

    def linear(cin, cout, use_bias=True):
        w = (jax.random.normal(next(keys), (cout, cin), jnp.float32)
             / jnp.sqrt(float(cin)))
        b = (jax.random.normal(next(keys), (cout,), jnp.float32) * 0.01
             if use_bias else None)
        return w, b

    # ResNet3D(Bottleneck, [1, 2, 4, 1])
    resnet = {'conv1_w': conv_w(3, 64, 7), 'bn1': bn(64), 'blocks': []}
    in_c = 64
    for channels, n_blocks, stride in [(64, 1, 1), (128, 2, 2),
                                       (256, 4, 2), (512, 1, 2)]:
        for bi in range(n_blocks):
            s = stride if bi == 0 else 1
            blk = {'stride': s,
                   'w1': conv_w(in_c, channels, 1), 'bn1': bn(channels),
                   'w2': conv_w(channels, channels, 3), 'bn2': bn(channels),
                   'w3': conv_w(channels, channels * 4, 1),
                   'bn3': bn(channels * 4)}
            if s != 1 or in_c != channels * 4:
                blk['down_w'] = conv_w(in_c, channels * 4, 1)
                blk['down_bn'] = bn(channels * 4)
            resnet['blocks'].append(blk)
            in_c = channels * 4

    # SEQ(seq_type='mlp'), hidden_dim=256, out_dim=256
    w0, _ = linear(50, 50, use_bias=False)
    w1, b1 = linear(50, 256 * 4)
    w2, b2 = linear(256 * 4, 256)
    seq_p = {'w0': w0, 'w1': w1, 'b1': b1, 'w2': w2, 'b2': b2}

    fw, fb = linear(512 * 4 + 256, classes)
    # NOTE: vox_fc / seq_fc exist in __init__ but are unused in forward.
    return {'resnet': resnet, 'seq': seq_p, 'fusion_w': fw, 'fusion_b': fb}


# ----------------------------------------------------------------------------
if __name__ == "__main__":
    key = jax.random.PRNGKey(0)
    kp, kv, ks = jax.random.split(key, 3)
    params = init_params(kp)

    # vox: (B=2, C=3, D=16, H=16, W=16)  — PyTorch NCDHW
    vox = jax.random.normal(kv, (2, 3, 16, 16, 16), jnp.float32)
    # seq: (B=2, 1, 50)  — SEQ('mlp') squeezes dim 1 and applies the MLP
    seq = jax.random.normal(ks, (2, 1, 50), jnp.float32)

    pred = mmf_peptide_forward(vox, seq, params)
    pred = jax.block_until_ready(pred)
    assert pred.shape == (2, 6), pred.shape
    assert bool(jnp.all(jnp.isfinite(pred)))
    print("KERNEL_OK")
</pallas_src>

<mosaic_0001>
module attributes {stable_mosaic.version = 11 : i64} {
  func.func @_seq_mlp_kernel(%arg0: memref<8x128xf32, #tpu.memory_space<vmem>>, %arg1: memref<128x128xf32, #tpu.memory_space<vmem>>, %arg2: memref<128x1024xf32, #tpu.memory_space<vmem>>, %arg3: memref<1x1024xf32, #tpu.memory_space<vmem>>, %arg4: memref<1024x256xf32, #tpu.memory_space<vmem>>, %arg5: memref<1x256xf32, #tpu.memory_space<vmem>>, %arg6: memref<8x256xf32, #tpu.memory_space<vmem>>) attributes {dimension_semantics = [], scalar_prefetch = 0 : i64, scratch_operands = 0 : i64, tpu.core_type = #tpu.core_type<tc>} {
    %c0 = arith.constant 0 : index
    %c0_0 = arith.constant 0 : index
    %0 = vector.load %arg0[%c0, %c0_0] : memref<8x128xf32, #tpu.memory_space<vmem>>, vector<8x128xf32>
    %c0_1 = arith.constant 0 : index
    %c0_2 = arith.constant 0 : index
    %1 = vector.load %arg1[%c0_1, %c0_2] : memref<128x128xf32, #tpu.memory_space<vmem>>, vector<128x128xf32>
    %cst = arith.constant dense<0.000000e+00> : vector<8x128xf32>
    %2 = tpu.matmul %0, %1, %cst {dimension_numbers = #tpu.dot_dimension_numbers<[1], [0], [0], [1], [0, 0, 1, 1], [], []>} : vector<8x128xf32>, vector<128x128xf32>, vector<8x128xf32> -> vector<8x128xf32>
    %cst_3 = arith.constant 0.000000e+00 : f32
    %3 = vector.broadcast %cst_3 : f32 to vector<8x128xf32>
    %4 = arith.maximumf %2, %3 : vector<8x128xf32>
    %c0_4 = arith.constant 0 : index
    %c0_5 = arith.constant 0 : index
    %5 = vector.load %arg2[%c0_4, %c0_5] : memref<128x1024xf32, #tpu.memory_space<vmem>>, vector<128x1024xf32>
    %cst_6 = arith.constant dense<0.000000e+00> : vector<8x1024xf32>
    %6 = tpu.matmul %4, %5, %cst_6 {dimension_numbers = #tpu.dot_dimension_numbers<[1], [0], [0], [1], [0, 0, 1, 1], [], []>} : vector<8x128xf32>, vector<128x1024xf32>, vector<8x1024xf32> -> vector<8x1024xf32>
    %c0_7 = arith.constant 0 : index
    %c0_8 = arith.constant 0 : index
    %7 = vector.load %arg3[%c0_7, %c0_8] : memref<1x1024xf32, #tpu.memory_space<vmem>>, vector<1x1024xf32>
    %8 = vector.broadcast %7 : vector<1x1024xf32> to vector<8x1024xf32>
    %9 = arith.addf %6, %8 : vector<8x1024xf32>
    %cst_9 = arith.constant 0.000000e+00 : f32
    %10 = vector.broadcast %cst_9 : f32 to vector<8x1024xf32>
    %11 = arith.maximumf %9, %10 : vector<8x1024xf32>
    %c0_10 = arith.constant 0 : index
    %c0_11 = arith.constant 0 : index
    %12 = vector.load %arg4[%c0_10, %c0_11] : memref<1024x256xf32, #tpu.memory_space<vmem>>, vector<1024x256xf32>
    %cst_12 = arith.constant dense<0.000000e+00> : vector<8x256xf32>
    %13 = tpu.matmul %11, %12, %cst_12 {dimension_numbers = #tpu.dot_dimension_numbers<[1], [0], [0], [1], [0, 0, 1, 1], [], []>} : vector<8x1024xf32>, vector<1024x256xf32>, vector<8x256xf32> -> vector<8x256xf32>
    %c0_13 = arith.constant 0 : index
    %c0_14 = arith.constant 0 : index
    %14 = vector.load %arg5[%c0_13, %c0_14] : memref<1x256xf32, #tpu.memory_space<vmem>>, vector<1x256xf32>
    %15 = vector.broadcast %14 : vector<1x256xf32> to vector<8x256xf32>
    %16 = arith.addf %13, %15 : vector<8x256xf32>
    %c0_15 = arith.constant 0 : index
    %c0_16 = arith.constant 0 : index
    %17 = vector.load %arg6[%c0_15, %c0_16] : memref<8x256xf32, #tpu.memory_space<vmem>>, vector<8x256xf32>
    tpu.vector_store %arg6[%c0_15, %c0_16], %16 {strides = array<i32>} : memref<8x256xf32, #tpu.memory_space<vmem>>, vector<8x256xf32>,
    return
  }
}

</mosaic_0001>

<llo_original>
// kernel: tpu_custom_call.1
$region0: #{tpu_custom_call.1}
  #allocation0 [shape = 'u32[]', space=smem, size = 0x4, offset = 0x4, fixed_abs, tag = 'smem constant byte address 0x4 - core index']
  #allocation1 [shape = 'u32[72,128]{1,0:T(1,128)}', space=vmem, size = 0x9000, scoped, tag = 'internal scratch']
  %s0 = inlined_call_operand.hbm [shape: f32[8,128], index: 0, kind: input, shape index: {}]
  %s1 = inlined_call_operand.hbm [shape: f32[128,128], index: 1, kind: input, shape index: {}]
  %s2 = inlined_call_operand.hbm [shape: f32[128,1024], index: 2, kind: input, shape index: {}]
  %s3 = inlined_call_operand.hbm [shape: f32[1,1024], index: 3, kind: input, shape index: {}]
  %s4 = inlined_call_operand.hbm [shape: f32[1024,256], index: 4, kind: input, shape index: {}]
  %s5 = inlined_call_operand.vmem [shape: f32[1,256], index: 5, kind: input, shape index: {}]
  %s6 = inlined_call_operand.hbm [shape: f32[8,256], index: 6, kind: output, shape index: {}]
  %s7 = sld [smem:[#allocation0]]
  $region54: #{tpu_custom_call.1} parent=0
    _
  %s9 = ssub.s32 1, %s7
  %s10 = scalar_select 0, %s9, %s7
  $region1: #{tpu_custom_call.1} parent=0
    #allocation2 [shape = 'u8[4096]{0}', space=vmem, size = 0x1000, scoped, tag = 'input window, operand 0, single buffered']
    #allocation3 [shape = 's32[1]{0}', space=sflag, size = 0x4, scoped, tag = 'scoped memory for tpu_custom_call.1']
    #allocation4 [shape = 's32[1]{0}', space=sflag, size = 0x4, scoped, tag = 'scoped memory for tpu_custom_call.1']
    #allocation5 [shape = 'u8[65536]{0}', space=vmem, size = 0x10000, scoped, tag = 'input window, operand 1, single buffered']
    #allocation6 [shape = 's32[1]{0}', space=sflag, size = 0x4, scoped, tag = 'scoped memory for tpu_custom_call.1']
    #allocation7 [shape = 'u8[524288]{0}', space=vmem, size = 0x80000, scoped, tag = 'input window, operand 2, single buffered']
    #allocation8 [shape = 'u8[4096]{0}', space=vmem, size = 0x1000, scoped, tag = 'input window, operand 3, single buffered']
    #allocation9 [shape = 's32[1]{0}', space=sflag, size = 0x4, scoped, tag = 'scoped memory for tpu_custom_call.1']
    #allocation10 [shape = 'u8[1048576]{0}', space=vmem, size = 0x100000, scoped, tag = 'input window, operand 4, single buffered']
    #allocation11 [shape = 'u8[8192]{0}', space=vmem, size = 0x2000, scoped, tag = 'output window, operand 0, single buffered']
    %11 = vsyncpa [#allocation3], 0
    %12 = vsyncpa [#allocation6], 0
    %13 = vsyncpa [#allocation9], 0
    %14 = vsyncpa [#allocation4], 0
    // Predicated region
    $region2: #{tpu_custom_call.1} parent=1 // pred_check
      _
    $region3: #{tpu_custom_call.1} parent=1 // pred_check_branch
      %16 = sbr.rel (0) target = $region5
    $region4: #{tpu_custom_call.1} parent=1 // pred_region
      %18 = vsyncadd [#allocation3], 0
      %s20 = sshll.u32 %s0, 4
      %s21 = int_to_ptr.hbm [resolvable:$true] %s20
      %s22 = sshll.u32 [#allocation2], 4
      %s23 = int_to_ptr.vmem [resolvable:$true] %s22
      %25 = dma.hbm_to_vmem [thread:$0]  %s21, 128, %s23, [#allocation3]
    $region5: #{tpu_custom_call.1} parent=1 // pred_fallthru
      _
    // Predicated region
    $region6: #{tpu_custom_call.1} parent=1 // pred_check
      _
    $region7: #{tpu_custom_call.1} parent=1 // pred_check_branch
      %27 = sbr.rel (0) target = $region9
    $region8: #{tpu_custom_call.1} parent=1 // pred_region
      %29 = vsyncadd [#allocation6], 0
      %s30 = sshll.u32 %s1, 4
      %s31 = int_to_ptr.hbm [resolvable:$true] %s30
      %s32 = sshll.u32 [#allocation5], 4
      %s33 = int_to_ptr.vmem [resolvable:$true] %s32
      %38 = dma.hbm_to_vmem [thread:$0]  %s31, 2048, %s33, [#allocation6], 128, 128, 8
    $region9: #{tpu_custom_call.1} parent=1 // pred_fallthru
      _
    // Predicated region
    $region10: #{tpu_custom_call.1} parent=1 // pred_check
      _
    $region11: #{tpu_custom_call.1} parent=1 // pred_check_branch
      %40 = sbr.rel (0) target = $region13
    $region12: #{tpu_custom_call.1} parent=1 // pred_region
      %42 = vsyncadd [#allocation6], 0
      %s43 = sshll.u32 %s2, 4
      %s44 = int_to_ptr.hbm [resolvable:$true] %s43
      %s45 = sshll.u32 [#allocation7], 4
      %s46 = int_to_ptr.vmem [resolvable:$true] %s45
      %51 = dma.hbm_to_vmem [thread:$0]  %s44, 16384, %s46, [#allocation6], 1024, 1024, 64
    $region13: #{tpu_custom_call.1} parent=1 // pred_fallthru
      _
    // Predicated region
    $region14: #{tpu_custom_call.1} parent=1 // pred_check
      _
    $region15: #{tpu_custom_call.1} parent=1 // pred_check_branch
      %53 = sbr.rel (0) target = $region17
    $region16: #{tpu_custom_call.1} parent=1 // pred_region
      %55 = vsyncadd [#allocation9], 0
      %s57 = sshll.u32 %s3, 4
      %s58 = int_to_ptr.hbm [resolvable:$true] %s57
      %s59 = sshll.u32 [#allocation8], 4
      %s60 = int_to_ptr.vmem [resolvable:$true] %s59
      %62 = dma.hbm_to_vmem [thread:$0]  %s58, 128, %s60, [#allocation9]
    $region17: #{tpu_custom_call.1} parent=1 // pred_fallthru
      _
    // Predicated region
    $region18: #{tpu_custom_call.1} parent=1 // pred_check
      _
    $region19: #{tpu_custom_call.1} parent=1 // pred_check_branch
      %64 = sbr.rel (0) target = $region21
    $region20: #{tpu_custom_call.1} parent=1 // pred_region
      %66 = vsyncadd [#allocation9], 0
      %s67 = sshll.u32 %s4, 4
      %s68 = int_to_ptr.hbm [resolvable:$true] %s67
      %s69 = sshll.u32 [#allocation10], 4
      %s70 = int_to_ptr.vmem [resolvable:$true] %s69
      %75 = dma.hbm_to_vmem [thread:$0]  %s68, 32768, %s70, [#allocation9], 256, 256, 16
    $region21: #{tpu_custom_call.1} parent=1 // pred_fallthru
      _
    // Predicated region
    $region22: #{tpu_custom_call.1} parent=1 // pred_check
      _
    $region23: #{tpu_custom_call.1} parent=1 // pred_check_branch
      %77 = sbr.rel (0) target = $region25
    $region24: #{tpu_custom_call.1} parent=1 // pred_region
      _
    $region25: #{tpu_custom_call.1} parent=1 // pred_fallthru
      _
    // Predicated region
    $region26: #{tpu_custom_call.1} parent=1 // pred_check
      _
    $region27: #{tpu_custom_call.1} parent=1 // pred_check_branch
      %79 = sbr.rel (0) target = $region29
    $region28: #{tpu_custom_call.1} parent=1 // pred_region
      %81 = dma.done [#allocation3], 128
    $region29: #{tpu_custom_call.1} parent=1 // pred_fallthru
      _
    // Predicated region
    $region30: #{tpu_custom_call.1} parent=1 // pred_check
      _
    $region31: #{tpu_custom_call.1} parent=1 // pred_check_branch
      %83 = sbr.rel (0) target = $region33
    $region32: #{tpu_custom_call.1} parent=1 // pred_region
      %85 = dma.done [#allocation6], 2048
    $region33: #{tpu_custom_call.1} parent=1 // pred_fallthru
      _
    // Predicated region
    $region34: #{tpu_custom_call.1} parent=1 // pred_check
      _
    $region35: #{tpu_custom_call.1} parent=1 // pred_check_branch
      %87 = sbr.rel (0) target = $region37
    $region36: #{tpu_custom_call.1} parent=1 // pred_region
      %89 = dma.done [#allocation6], 16384
    $region37: #{tpu_custom_call.1} parent=1 // pred_fallthru
      _
    // Predicated region
    $region38: #{tpu_custom_call.1} parent=1 // pred_check
      _
    $region39: #{tpu_custom_call.1} parent=1 // pred_check_branch
      %91 = sbr.rel (0) target = $region41
    $region40: #{tpu_custom_call.1} parent=1 // pred_region
      %93 = dma.done [#allocation9], 128
    $region41: #{tpu_custom_call.1} parent=1 // pred_fallthru
      _
    // Predicated region
    $region42: #{tpu_custom_call.1} parent=1 // pred_check
      _
    $region43: #{tpu_custom_call.1} parent=1 // pred_check_branch
      %95 = sbr.rel (0) target = $region45
    $region44: #{tpu_custom_call.1} parent=1 // pred_region
      %97 = dma.done [#allocation9], 32768
    $region45: #{tpu_custom_call.1} parent=1 // pred_fallthru
      _
    %v98 = vld [vmem:[#allocation2] sm:$0xff]
    %v99 = vld [vmem:[#allocation5] sm:$0xff]
    %v100 = vld [vmem:[#allocation5 + $0x8] sm:$0xff]
    %v101 = vld [vmem:[#allocation5 + $0x10] sm:$0xff]
    %v102 = vld [vmem:[#allocation5 + $0x18] sm:$0xff]
    %v103 = vld [vmem:[#allocation5 + $0x20] sm:$0xff]
    %v104 = vld [vmem:[#allocation5 + $0x28] sm:$0xff]
    %v105 = vld [vmem:[#allocation5 + $0x30] sm:$0xff]
    %v106 = vld [vmem:[#allocation5 + $0x38] sm:$0xff]
    %v107 = vld [vmem:[#allocation5 + $0x40] sm:$0xff]
    %v108 = vld [vmem:[#allocation5 + $0x48] sm:$0xff]
    %v109 = vld [vmem:[#allocation5 + $0x50] sm:$0xff]
    %v110 = vld [vmem:[#allocation5 + $0x58] sm:$0xff]
    %v111 = vld [vmem:[#allocation5 + $0x60] sm:$0xff]
    %v112 = vld [vmem:[#allocation5 + $0x68] sm:$0xff]
    %v113 = vld [vmem:[#allocation5 + $0x70] sm:$0xff]
    %v114 = vld [vmem:[#allocation5 + $0x78] sm:$0xff]
    %115 = vmatpush.msra.mxu0 %v114
    %116 = vmatpush.msra.mxu0 %v113
    %117 = vmatpush.msra.mxu0 %v112
    %118 = vmatpush.msra.mxu0 %v111
    %119 = vmatpush.msra.mxu0 %v110
    %120 = vmatpush.msra.mxu0 %v109
    %121 = vmatpush.msra.mxu0 %v108
    %122 = vmatpush.msra.mxu0 %v107
    %123 = vmatpush.msra.mxu0 %v106
    %124 = vmatpush.msra.mxu0 %v105
    %125 = vmatpush.msra.mxu0 %v104
    %126 = vmatpush.msra.mxu0 %v103
    %127 = vmatpush.msra.mxu0 %v102
    %128 = vmatpush.msra.mxu0 %v101
    %129 = vmatpush.msra.mxu0 %v100
    %130 = vmatpush.msra.mxu0 %v99
    %131 = vmatmul.f32.gmra.mxu0 %v98
    %v132 = vpop.f32.mrf.mxu0
    %v133 = vadd.f32 0.0, %v132
    %134 = vdwg.mxu0
    %v135 = vmax.f32 %v133, 0.0
    %v136 = vld [vmem:[#allocation7] sm:$0xff]
    %v137 = vld [vmem:[#allocation7 + $0x8] sm:$0xff]
    %v138 = vld [vmem:[#allocation7 + $0x10] sm:$0xff]
    %v139 = vld [vmem:[#allocation7 + $0x18] sm:$0xff]
    %v140 = vld [vmem:[#allocation7 + $0x20] sm:$0xff]
    %v141 = vld [vmem:[#allocation7 + $0x28] sm:$0xff]
    %v142 = vld [vmem:[#allocation7 + $0x30] sm:$0xff]
    %v143 = vld [vmem:[#allocation7 + $0x38] sm:$0xff]
    %v144 = vld [vmem:[#allocation7 + $0x40] sm:$0xff]
    %v145 = vld [vmem:[#allocation7 + $0x48] sm:$0xff]
    %v146 = vld [vmem:[#allocation7 + $0x50] sm:$0xff]
    %v147 = vld [vmem:[#allocation7 + $0x58] sm:$0xff]
    %v148 = vld [vmem:[#allocation7 + $0x60] sm:$0xff]
    %v149 = vld [vmem:[#allocation7 + $0x68] sm:$0xff]
    %v150 = vld [vmem:[#allocation7 + $0x70] sm:$0xff]
    %v151 = vld [vmem:[#allocation7 + $0x78] sm:$0xff]
    %v152 = vld [vmem:[#allocation7 + $0x80] sm:$0xff]
    %v153 = vld [vmem:[#allocation7 + $0x88] sm:$0xff]
    %v154 = vld [vmem:[#allocation7 + $0x90] sm:$0xff]
    %v155 = vld [vmem:[#allocation7 + $0x98] sm:$0xff]
    %v156 = vld [vmem:[#allocation7 + $0xa0] sm:$0xff]
    %v157 = vld [vmem:[#allocation7 + $0xa8] sm:$0xff]
    %v158 = vld [vmem:[#allocation7 + $0xb0] sm:$0xff]
    %v159 = vld [vmem:[#allocation7 + $0xb8] sm:$0xff]
    %v160 = vld [vmem:[#allocation7 + $0xc0] sm:$0xff]
    %v161 = vld [vmem:[#allocation7 + $0xc8] sm:$0xff]
    %v162 = vld [vmem:[#allocation7 + $0xd0] sm:$0xff]
    %v163 = vld [vmem:[#allocation7 + $0xd8] sm:$0xff]
    %v164 = vld [vmem:[#allocation7 + $0xe0] sm:$0xff]
    %v165 = vld [vmem:[#allocation7 + $0xe8] sm:$0xff]
    %v166 = vld [vmem:[#allocation7 + $0xf0] sm:$0xff]
    %v167 = vld [vmem:[#allocation7 + $0xf8] sm:$0xff]
    %v168 = vld [vmem:[#allocation7 + $0x100] sm:$0xff]
    %v169 = vld [vmem:[#allocation7 + $0x108] sm:$0xff]
    %v170 = vld [vmem:[#allocation7 + $0x110] sm:$0xff]
    %v171 = vld [vmem:[#allocation7 + $0x118] sm:$0xff]
    %v172 = vld [vmem:[#allocation7 + $0x120] sm:$0xff]
    %v173 = vld [vmem:[#allocation7 + $0x128] sm:$0xff]
    %v174 = vld [vmem:[#allocation7 + $0x130] sm:$0xff]
    %v175 = vld [vmem:[#allocation7 + $0x138] sm:$0xff]
    %v176 = vld [vmem:[#allocation7 + $0x140] sm:$0xff]
    %v177 = vld [vmem:[#allocation7 + $0x148] sm:$0xff]
    %v178 = vld [vmem:[#allocation7 + $0x150] sm:$0xff]
    %v179 = vld [vmem:[#allocation7 + $0x158] sm:$0xff]
    %v180 = vld [vmem:[#allocation7 + $0x160] sm:$0xff]
    %v181 = vld [vmem:[#allocation7 + $0x168] sm:$0xff]
    %v182 = vld [vmem:[#allocation7 + $0x170] sm:$0xff]
    %v183 = vld [vmem:[#allocation7 + $0x178] sm:$0xff]
    %v184 = vld [vmem:[#allocation7 + $0x180] sm:$0xff]
    %v185 = vld [vmem:[#allocation7 + $0x188] sm:$0xff]
    %v186 = vld [vmem:[#allocation7 + $0x190] sm:$0xff]
    %v187 = vld [vmem:[#allocation7 + $0x198] sm:$0xff]
    %v188 = vld [vmem:[#allocation7 + $0x1a0] sm:$0xff]
    %v189 = vld [vmem:[#allocation7 + $0x1a8] sm:$0xff]
    %v190 = vld [vmem:[#allocation7 + $0x1b0] sm:$0xff]
    %v191 = vld [vmem:[#allocation7 + $0x1b8] sm:$0xff]
    %v192 = vld [vmem:[#allocation7 + $0x1c0] sm:$0xff]
    %v193 = vld [vmem:[#allocation7 + $0x1c8] sm:$0xff]
    %v194 = vld [vmem:[#allocation7 + $0x1d0] sm:$0xff]
    %v195 = vld [vmem:[#allocation7 + $0x1d8] sm:$0xff]
    %v196 = vld [vmem:[#allocation7 + $0x1e0] sm:$0xff]
    %v197 = vld [vmem:[#allocation7 + $0x1e8] sm:$0xff]
    %v198 = vld [vmem:[#allocation7 + $0x1f0] sm:$0xff]
    %v199 = vld [vmem:[#allocation7 + $0x1f8] sm:$0xff]
    %v200 = vld [vmem:[#allocation7 + $0x200] sm:$0xff]
    %v201 = vld [vmem:[#allocation7 + $0x208] sm:$0xff]
    %v202 = vld [vmem:[#allocation7 + $0x210] sm:$0xff]
    %v203 = vld [vmem:[#allocation7 + $0x218] sm:$0xff]
    %v204 = vld [vmem:[#allocation7 + $0x220] sm:$0xff]
    %v205 = vld [vmem:[#allocation7 + $0x228] sm:$0xff]
    %v206 = vld [vmem:[#allocation7 + $0x230] sm:$0xff]
    %v207 = vld [vmem:[#allocation7 + $0x238] sm:$0xff]
    %v208 = vld [vmem:[#allocation7 + $0x240] sm:$0xff]
    %v209 = vld [vmem:[#allocation7 + $0x248] sm:$0xff]
    %v210 = vld [vmem:[#allocation7 + $0x250] sm:$0xff]
    %v211 = vld [vmem:[#allocation7 + $0x258] sm:$0xff]
    %v212 = vld [vmem:[#allocation7 + $0x260] sm:$0xff]
    %v213 = vld [vmem:[#allocation7 + $0x268] sm:$0xff]
    %v214 = vld [vmem:[#allocation7 + $0x270] sm:$0xff]
    %v215 = vld [vmem:[#allocation7 + $0x278] sm:$0xff]
    %v216 = vld [vmem:[#allocation7 + $0x280] sm:$0xff]
    %v217 = vld [vmem:[#allocation7 + $0x288] sm:$0xff]
    %v218 = vld [vmem:[#allocation7 + $0x290] sm:$0xff]
    %v219 = vld [vmem:[#allocation7 + $0x298] sm:$0xff]
    %v220 = vld [vmem:[#allocation7 + $0x2a0] sm:$0xff]
    %v221 = vld [vmem:[#allocation7 + $0x2a8] sm:$0xff]
    %v222 = vld [vmem:[#allocation7 + $0x2b0] sm:$0xff]
    %v223 = vld [vmem:[#allocation7 + $0x2b8] sm:$0xff]
    %v224 = vld [vmem:[#allocation7 + $0x2c0] sm:$0xff]
    %v225 = vld [vmem:[#allocation7 + $0x2c8] sm:$0xff]
    %v226 = vld [vmem:[#allocation7 + $0x2d0] sm:$0xff]
    %v227 = vld [vmem:[#allocation7 + $0x2d8] sm:$0xff]
    %v228 = vld [vmem:[#allocation7 + $0x2e0] sm:$0xff]
    %v229 = vld [vmem:[#allocation7 + $0x2e8] sm:$0xff]
    %v230 = vld [vmem:[#allocation7 + $0x2f0] sm:$0xff]
    %v231 = vld [vmem:[#allocation7 + $0x2f8] sm:$0xff]
    %v232 = vld [vmem:[#allocation7 + $0x300] sm:$0xff]
    %v233 = vld [vmem:[#allocation7 + $0x308] sm:$0xff]
    %v234 = vld [vmem:[#allocation7 + $0x310] sm:$0xff]
    %v235 = vld [vmem:[#allocation7 + $0x318] sm:$0xff]
    %v236 = vld [vmem:[#allocation7 + $0x320] sm:$0xff]
    %v237 = vld [vmem:[#allocation7 + $0x328] sm:$0xff]
    %v238 = vld [vmem:[#allocation7 + $0x330] sm:$0xff]
    %v239 = vld [vmem:[#allocation7 + $0x338] sm:$0xff]
    %v240 = vld [vmem:[#allocation7 + $0x340] sm:$0xff]
    %v241 = vld [vmem:[#allocation7 + $0x348] sm:$0xff]
    %v242 = vld [vmem:[#allocation7 + $0x350] sm:$0xff]
    %v243 = vld [vmem:[#allocation7 + $0x358] sm:$0xff]
    %v244 = vld [vmem:[#allocation7 + $0x360] sm:$0xff]
    %v245 = vld [vmem:[#allocation7 + $0x368] sm:$0xff]
    %v246 = vld [vmem:[#allocation7 + $0x370] sm:$0xff]
    %v247 = vld [vmem:[#allocation7 + $0x378] sm:$0xff]
    %v248 = vld [vmem:[#allocation7 + $0x380] sm:$0xff]
    %v249 = vld [vmem:[#allocation7 + $0x388] sm:$0xff]
    %v250 = vld [vmem:[#allocation7 + $0x390] sm:$0xff]
    %v251 = vld [vmem:[#allocation7 + $0x398] sm:$0xff]
    %v252 = vld [vmem:[#allocation7 + $0x3a0] sm:$0xff]
    %v253 = vld [vmem:[#allocation7 + $0x3a8] sm:$0xff]
    %v254 = vld [vmem:[#allocation7 + $0x3b0] sm:$0xff]
    %v255 = vld [vmem:[#allocation7 + $0x3b8] sm:$0xff]
    %v256 = vld [vmem:[#allocation7 + $0x3c0] sm:$0xff]
    %v257 = vld [vmem:[#allocation7 + $0x3c8] sm:$0xff]
    %v258 = vld [vmem:[#allocation7 + $0x3d0] sm:$0xff]
    %v259 = vld [vmem:[#allocation7 + $0x3d8] sm:$0xff]
    %v260 = vld [vmem:[#allocation7 + $0x3e0] sm:$0xff]
    %v261 = vld [vmem:[#allocation7 + $0x3e8] sm:$0xff]
    %v262 = vld [vmem:[#allocation7 + $0x3f0] sm:$0xff]
    %v263 = vld [vmem:[#allocation7 + $0x3f8] sm:$0xff]
    %v264 = vld [vmem:[#allocation8] sm:$0xff]
    %v266 = vperm.slane %v264, 0
    %v267 = vperm.slane %v264, 1
    %v268 = vperm.slane %v264, 2
    %v269 = vperm.slane %v264, 3
    %v270 = vperm.slane %v264, 4
    %v271 = vperm.slane %v264, 5
    %v272 = vperm.slane %v264, 6
    %v273 = vperm.slane %v264, 7
    %282 = vmatpush.msra.mxu0 %v256
    %283 = vmatpush.msra.mxu0 %v248
    %284 = vmatpush.msra.mxu0 %v240
    %285 = vmatpush.msra.mxu0 %v232
    %286 = vmatpush.msra.mxu0 %v224
    %287 = vmatpush.msra.mxu0 %v216
    %288 = vmatpush.msra.mxu0 %v208
    %289 = vmatpush.msra.mxu0 %v200
    %290 = vmatpush.msra.mxu0 %v192
    %291 = vmatpush.msra.mxu0 %v184
    %292 = vmatpush.msra.mxu0 %v176
    %293 = vmatpush.msra.mxu0 %v168
    %294 = vmatpush.msra.mxu0 %v160
    %295 = vmatpush.msra.mxu0 %v152
    %296 = vmatpush.msra.mxu0 %v144
    %297 = vmatpush.msra.mxu0 %v136
    %298 = vmatmul.f32.gmra.mxu0 %v135
    %v299 = vpop.f32.mrf.mxu0
    %v300 = vadd.f32 %v266, %v299
    %301 = vdwg.mxu0
    %302 = vmatpush.msra.mxu0 %v257
    %303 = vmatpush.msra.mxu0 %v249
    %304 = vmatpush.msra.mxu0 %v241
    %305 = vmatpush.msra.mxu0 %v233
    %306 = vmatpush.msra.mxu0 %v225
    %307 = vmatpush.msra.mxu0 %v217
    %308 = vmatpush.msra.mxu0 %v209
    %309 = vmatpush.msra.mxu0 %v201
    %310 = vmatpush.msra.mxu0 %v193
    %311 = vmatpush.msra.mxu0 %v185
    %312 = vmatpush.msra.mxu0 %v177
    %313 = vmatpush.msra.mxu0 %v169
    %314 = vmatpush.msra.mxu0 %v161
    %315 = vmatpush.msra.mxu0 %v153
    %316 = vmatpush.msra.mxu0 %v145
    %317 = vmatpush.msra.mxu0 %v137
    %318 = vmatmul.f32.gmra.mxu0 %v135
    %v319 = vpop.f32.mrf.mxu0
    %v320 = vadd.f32 %v267, %v319
    %321 = vdwg.mxu0
    %322 = vmatpush.msra.mxu0 %v258
    %323 = vmatpush.msra.mxu0 %v250
    %324 = vmatpush.msra.mxu0 %v242
    %325 = vmatpush.msra.mxu0 %v234
    %326 = vmatpush.msra.mxu0 %v226
    %327 = vmatpush.msra.mxu0 %v218
    %328 = vmatpush.msra.mxu0 %v210
    %329 = vmatpush.msra.mxu0 %v202
    %330 = vmatpush.msra.mxu0 %v194
    %331 = vmatpush.msra.mxu0 %v186
    %332 = vmatpush.msra.mxu0 %v178
    %333 = vmatpush.msra.mxu0 %v170
    %334 = vmatpush.msra.mxu0 %v162
    %335 = vmatpush.msra.mxu0 %v154
    %336 = vmatpush.msra.mxu0 %v146
    %337 = vmatpush.msra.mxu0 %v138
    %338 = vmatmul.f32.gmra.mxu0 %v135
    %v339 = vpop.f32.mrf.mxu0
    %v340 = vadd.f32 %v268, %v339
    %341 = vdwg.mxu0
    %342 = vmatpush.msra.mxu0 %v259
    %343 = vmatpush.msra.mxu0 %v251
    %344 = vmatpush.msra.mxu0 %v243
    %345 = vmatpush.msra.mxu0 %v235
    %346 = vmatpush.msra.mxu0 %v227
    %347 = vmatpush.msra.mxu0 %v219
    %348 = vmatpush.msra.mxu0 %v211
    %349 = vmatpush.msra.mxu0 %v203
    %350 = vmatpush.msra.mxu0 %v195
    %351 = vmatpush.msra.mxu0 %v187
    %352 = vmatpush.msra.mxu0 %v179
    %353 = vmatpush.msra.mxu0 %v171
    %354 = vmatpush.msra.mxu0 %v163
    %355 = vmatpush.msra.mxu0 %v155
    %356 = vmatpush.msra.mxu0 %v147
    %357 = vmatpush.msra.mxu0 %v139
    %358 = vmatmul.f32.gmra.mxu0 %v135
    %v359 = vpop.f32.mrf.mxu0
    %v360 = vadd.f32 %v269, %v359
    %361 = vdwg.mxu0
    %362 = vmatpush.msra.mxu0 %v260
    %363 = vmatpush.msra.mxu0 %v252
    %364 = vmatpush.msra.mxu0 %v244
    %365 = vmatpush.msra.mxu0 %v236
    %366 = vmatpush.msra.mxu0 %v228
    %367 = vmatpush.msra.mxu0 %v220
    %368 = vmatpush.msra.mxu0 %v212
    %369 = vmatpush.msra.mxu0 %v204
    %370 = vmatpush.msra.mxu0 %v196
    %371 = vmatpush.msra.mxu0 %v188
    %372 = vmatpush.msra.mxu0 %v180
    %373 = vmatpush.msra.mxu0 %v172
    %374 = vmatpush.msra.mxu0 %v164
    %375 = vmatpush.msra.mxu0 %v156
    %376 = vmatpush.msra.mxu0 %v148
    %377 = vmatpush.msra.mxu0 %v140
    %378 = vmatmul.f32.gmra.mxu0 %v135
    %v379 = vpop.f32.mrf.mxu0
    %v380 = vadd.f32 %v270, %v379
    %381 = vdwg.mxu0
    %382 = vmatpush.msra.mxu0 %v261
    %383 = vmatpush.msra.mxu0 %v253
    %384 = vmatpush.msra.mxu0 %v245
    %385 = vmatpush.msra.mxu0 %v237
    %386 = vmatpush.msra.mxu0 %v229
    %387 = vmatpush.msra.mxu0 %v221
    %388 = vmatpush.msra.mxu0 %v213
    %389 = vmatpush.msra.mxu0 %v205
    %390 = vmatpush.msra.mxu0 %v197
    %391 = vmatpush.msra.mxu0 %v189
    %392 = vmatpush.msra.mxu0 %v181
    %393 = vmatpush.msra.mxu0 %v173
    %394 = vmatpush.msra.mxu0 %v165
    %395 = vmatpush.msra.mxu0 %v157
    %396 = vmatpush.msra.mxu0 %v149
    %397 = vmatpush.msra.mxu0 %v141
    %398 = vmatmul.f32.gmra.mxu0 %v135
    %v399 = vpop.f32.mrf.mxu0
    %v400 = vadd.f32 %v271, %v399
    %401 = vdwg.mxu0
    %402 = vmatpush.msra.mxu0 %v262
    %403 = vmatpush.msra.mxu0 %v254
    %404 = vmatpush.msra.mxu0 %v246
    %405 = vmatpush.msra.mxu0 %v238
    %406 = vmatpush.msra.mxu0 %v230
    %407 = vmatpush.msra.mxu0 %v222
    %408 = vmatpush.msra.mxu0 %v214
    %409 = vmatpush.msra.mxu0 %v206
    %410 = vmatpush.msra.mxu0 %v198
    %411 = vmatpush.msra.mxu0 %v190
    %412 = vmatpush.msra.mxu0 %v182
    %413 = vmatpush.msra.mxu0 %v174
    %414 = vmatpush.msra.mxu0 %v166
    %415 = vmatpush.msra.mxu0 %v158
    %416 = vmatpush.msra.mxu0 %v150
    %417 = vmatpush.msra.mxu0 %v142
    %418 = vmatmul.f32.gmra.mxu0 %v135
    %v419 = vpop.f32.mrf.mxu0
    %v420 = vadd.f32 %v272, %v419
    %421 = vdwg.mxu0
    %422 = vmatpush.msra.mxu0 %v263
    %423 = vmatpush.msra.mxu0 %v255
    %424 = vmatpush.msra.mxu0 %v247
    %425 = vmatpush.msra.mxu0 %v239
    %426 = vmatpush.msra.mxu0 %v231
    %427 = vmatpush.msra.mxu0 %v223
    %428 = vmatpush.msra.mxu0 %v215
    %429 = vmatpush.msra.mxu0 %v207
    %430 = vmatpush.msra.mxu0 %v199
    %431 = vmatpush.msra.mxu0 %v191
    %432 = vmatpush.msra.mxu0 %v183
    %433 = vmatpush.msra.mxu0 %v175
    %434 = vmatpush.msra.mxu0 %v167
    %435 = vmatpush.msra.mxu0 %v159
    %436 = vmatpush.msra.mxu0 %v151
    %437 = vmatpush.msra.mxu0 %v143
    %438 = vmatmul.f32.gmra.mxu0 %v135
    %v439 = vpop.f32.mrf.mxu0
    %v440 = vadd.f32 %v273, %v439
    %441 = vdwg.mxu0
    %v442 = vmax.f32 %v300, 0.0
    %v443 = vmax.f32 %v320, 0.0
    %v444 = vmax.f32 %v340, 0.0
    %v445 = vmax.f32 %v360, 0.0
    %v446 = vmax.f32 %v380, 0.0
    %v447 = vmax.f32 %v400, 0.0
    %v448 = vmax.f32 %v420, 0.0
    %v449 = vmax.f32 %v440, 0.0
    %v450 = vld [vmem:[#allocation10] sm:$0xff]
    %v451 = vld [vmem:[#allocation10 + $0x8] sm:$0xff]
    %v452 = vld [vmem:[#allocation10 + $0x10] sm:$0xff]
    %v453 = vld [vmem:[#allocation10 + $0x18] sm:$0xff]
    %v454 = vld [vmem:[#allocation10 + $0x20] sm:$0xff]
    %v455 = vld [vmem:[#allocation10 + $0x28] sm:$0xff]
    %v456 = vld [vmem:[#allocation10 + $0x30] sm:$0xff]
    %v457 = vld [vmem:[#allocation10 + $0x38] sm:$0xff]
    %v458 = vld [vmem:[#allocation10 + $0x40] sm:$0xff]
    %v459 = vld [vmem:[#allocation10 + $0x48] sm:$0xff]
    %v460 = vld [vmem:[#allocation10 + $0x50] sm:$0xff]
    %v461 = vld [vmem:[#allocation10 + $0x58] sm:$0xff]
    %v462 = vld [vmem:[#allocation10 + $0x60] sm:$0xff]
    %v463 = vld [vmem:[#allocation10 + $0x68] sm:$0xff]
    %v464 = vld [vmem:[#allocation10 + $0x70] sm:$0xff]
    %v465 = vld [vmem:[#allocation10 + $0x78] sm:$0xff]
    %v466 = vld [vmem:[#allocation10 + $0x80] sm:$0xff]
    %v467 = vld [vmem:[#allocation10 + $0x88] sm:$0xff]
    %v468 = vld [vmem:[#allocation10 + $0x90] sm:$0xff]
    %v469 = vld [vmem:[#allocation10 + $0x98] sm:$0xff]
    %v470 = vld [vmem:[#allocation10 + $0xa0] sm:$0xff]
    %v471 = vld [vmem:[#allocation10 + $0xa8] sm:$0xff]
    %v472 = vld [vmem:[#allocation10 + $0xb0] sm:$0xff]
    %v473 = vld [vmem:[#allocation10 + $0xb8] sm:$0xff]
    %v474 = vld [vmem:[#allocation10 + $0xc0] sm:$0xff]
    %v475 = vld [vmem:[#allocation10 + $0xc8] sm:$0xff]
    %v476 = vld [vmem:[#allocation10 + $0xd0] sm:$0xff]
    %v477 = vld [vmem:[#allocation10 + $0xd8] sm:$0xff]
    %v478 = vld [vmem:[#allocation10 + $0xe0] sm:$0xff]
    %v479 = vld [vmem:[#allocation10 + $0xe8] sm:$0xff]
    %v480 = vld [vmem:[#allocation10 + $0xf0] sm:$0xff]
    %v481 = vld [vmem:[#allocation10 + $0xf8] sm:$0xff]
    %v482 = vld [vmem:[#allocation10 + $0x100] sm:$0xff]
    %v483 = vld [vmem:[#allocation10 + $0x108] sm:$0xff]
    %v484 = vld [vmem:[#allocation10 + $0x110] sm:$0xff]
    %v485 = vld [vmem:[#allocation10 + $0x118] sm:$0xff]
    %v486 = vld [vmem:[#allocation10 + $0x120] sm:$0xff]
    %v487 = vld [vmem:[#allocation10 + $0x128] sm:$0xff]
    %v488 = vld [vmem:[#allocation10 + $0x130] sm:$0xff]
    %v489 = vld [vmem:[#allocation10 + $0x138] sm:$0xff]
    %v490 = vld [vmem:[#allocation10 + $0x140] sm:$0xff]
    %v491 = vld [vmem:[#allocation10 + $0x148] sm:$0xff]
    %v492 = vld [vmem:[#allocation10 + $0x150] sm:$0xff]
    %v493 = vld [vmem:[#allocation10 + $0x158] sm:$0xff]
    %v494 = vld [vmem:[#allocation10 + $0x160] sm:$0xff]
    %v495 = vld [vmem:[#allocation10 + $0x168] sm:$0xff]
    %v496 = vld [vmem:[#allocation10 + $0x170] sm:$0xff]
    %v497 = vld [vmem:[#allocation10 + $0x178] sm:$0xff]
    %v498 = vld [vmem:[#allocation10 + $0x180] sm:$0xff]
    %v499 = vld [vmem:[#allocation10 + $0x188] sm:$0xff]
    %v500 = vld [vmem:[#allocation10 + $0x190] sm:$0xff]
    %v501 = vld [vmem:[#allocation10 + $0x198] sm:$0xff]
    %v502 = vld [vmem:[#allocation10 + $0x1a0] sm:$0xff]
    %v503 = vld [vmem:[#allocation10 + $0x1a8] sm:$0xff]
    %v504 = vld [vmem:[#allocation10 + $0x1b0] sm:$0xff]
    %v505 = vld [vmem:[#allocation10 + $0x1b8] sm:$0xff]
    %v506 = vld [vmem:[#allocation10 + $0x1c0] sm:$0xff]
    %v507 = vld [vmem:[#allocation10 + $0x1c8] sm:$0xff]
    %v508 = vld [vmem:[#allocation10 + $0x1d0] sm:$0xff]
    %v509 = vld [vmem:[#allocation10 + $0x1d8] sm:$0xff]
    %v510 = vld [vmem:[#allocation10 + $0x1e0] sm:$0xff]
    %v511 = vld [vmem:[#allocation10 + $0x1e8] sm:$0xff]
    %v512 = vld [vmem:[#allocation10 + $0x1f0] sm:$0xff]
    %v513 = vld [vmem:[#allocation10 + $0x1f8] sm:$0xff]
    %v514 = vld [vmem:[#allocation10 + $0x200] sm:$0xff]
    %v515 = vld [vmem:[#allocation10 + $0x208] sm:$0xff]
    %v516 = vld [vmem:[#allocation10 + $0x210] sm:$0xff]
    %v517 = vld [vmem:[#allocation10 + $0x218] sm:$0xff]
    %v518 = vld [vmem:[#allocation10 + $0x220] sm:$0xff]
    %v519 = vld [vmem:[#allocation10 + $0x228] sm:$0xff]
    %v520 = vld [vmem:[#allocation10 + $0x230] sm:$0xff]
    %v521 = vld [vmem:[#allocation10 + $0x238] sm:$0xff]
    %v522 = vld [vmem:[#allocation10 + $0x240] sm:$0xff]
    %v523 = vld [vmem:[#allocation10 + $0x248] sm:$0xff]
    %v524 = vld [vmem:[#allocation10 + $0x250] sm:$0xff]
    %v525 = vld [vmem:[#allocation10 + $0x258] sm:$0xff]
    %v526 = vld [vmem:[#allocation10 + $0x260] sm:$0xff]
    %v527 = vld [vmem:[#allocation10 + $0x268] sm:$0xff]
    %v528 = vld [vmem:[#allocation10 + $0x270] sm:$0xff]
    %v529 = vld [vmem:[#allocation10 + $0x278] sm:$0xff]
    %v530 = vld [vmem:[#allocation10 + $0x280] sm:$0xff]
    %v531 = vld [vmem:[#allocation10 + $0x288] sm:$0xff]
    %v532 = vld [vmem:[#allocation10 + $0x290] sm:$0xff]
    %v533 = vld [vmem:[#allocation10 + $0x298] sm:$0xff]
    %v534 = vld [vmem:[#allocation10 + $0x2a0] sm:$0xff]
    %v535 = vld [vmem:[#allocation10 + $0x2a8] sm:$0xff]
    %v536 = vld [vmem:[#allocation10 + $0x2b0] sm:$0xff]
    %v537 = vld [vmem:[#allocation10 + $0x2b8] sm:$0xff]
    %v538 = vld [vmem:[#allocation10 + $0x2c0] sm:$0xff]
    %v539 = vld [vmem:[#allocation10 + $0x2c8] sm:$0xff]
    %v540 = vld [vmem:[#allocation10 + $0x2d0] sm:$0xff]
    %v541 = vld [vmem:[#allocation10 + $0x2d8] sm:$0xff]
    %v542 = vld [vmem:[#allocation10 + $0x2e0] sm:$0xff]
    %v543 = vld [vmem:[#allocation10 + $0x2e8] sm:$0xff]
    %v544 = vld [vmem:[#allocation10 + $0x2f0] sm:$0xff]
    %v545 = vld [vmem:[#allocation10 + $0x2f8] sm:$0xff]
    %v546 = vld [vmem:[#allocation10 + $0x300] sm:$0xff]
    %v547 = vld [vmem:[#allocation10 + $0x308] sm:$0xff]
    %v548 = vld [vmem:[#allocation10 + $0x310] sm:$0xff]
    %v549 = vld [vmem:[#allocation10 + $0x318] sm:$0xff]
    %v550 = vld [vmem:[#allocation10 + $0x320] sm:$0xff]
    %v551 = vld [vmem:[#allocation10 + $0x328] sm:$0xff]
    %v552 = vld [vmem:[#allocation10 + $0x330] sm:$0xff]
    %v553 = vld [vmem:[#allocation10 + $0x338] sm:$0xff]
    %v554 = vld [vmem:[#allocation10 + $0x340] sm:$0xff]
    %v555 = vld [vmem:[#allocation10 + $0x348] sm:$0xff]
    %v556 = vld [vmem:[#allocation10 + $0x350] sm:$0xff]
    %v557 = vld [vmem:[#allocation10 + $0x358] sm:$0xff]
    %v558 = vld [vmem:[#allocation10 + $0x360] sm:$0xff]
    %v559 = vld [vmem:[#allocation10 + $0x368] sm:$0xff]
    %v560 = vld [vmem:[#allocation10 + $0x370] sm:$0xff]
    %v561 = vld [vmem:[#allocation10 + $0x378] sm:$0xff]
    %v562 = vld [vmem:[#allocation10 + $0x380] sm:$0xff]
    %v563 = vld [vmem:[#allocation10 + $0x388] sm:$0xff]
    %v564 = vld [vmem:[#allocation10 + $0x390] sm:$0xff]
    %v565 = vld [vmem:[#allocation10 + $0x398] sm:$0xff]
    %v566 = vld [vmem:[#allocation10 + $0x3a0] sm:$0xff]
    %v567 = vld [vmem:[#allocation10 + $0x3a8] sm:$0xff]
    %v568 = vld [vmem:[#allocation10 + $0x3b0] sm:$0xff]
    %v569 = vld [vmem:[#allocation10 + $0x3b8] sm:$0xff]
    %v570 = vld [vmem:[#allocation10 + $0x3c0] sm:$0xff]
    %v571 = vld [vmem:[#allocation10 + $0x3c8] sm:$0xff]
    %v572 = vld [vmem:[#allocation10 + $0x3d0] sm:$0xff]
    %v573 = vld [vmem:[#allocation10 + $0x3d8] sm:$0xff]
    %v574 = vld [vmem:[#allocation10 + $0x3e0] sm:$0xff]
    %v575 = vld [vmem:[#allocation10 + $0x3e8] sm:$0xff]
    %v576 = vld [vmem:[#allocation10 + $0x3f0] sm:$0xff]
    %v577 = vld [vmem:[#allocation10 + $0x3f8] sm:$0xff]
    %v578 = vld [vmem:[#allocation10 + $0x400] sm:$0xff]
    %v579 = vld [vmem:[#allocation10 + $0x408] sm:$0xff]
    %v580 = vld [vmem:[#allocation10 + $0x410] sm:$0xff]
    %v581 = vld [vmem:[#allocation10 + $0x418] sm:$0xff]
    %v582 = vld [vmem:[#allocation10 + $0x420] sm:$0xff]
    %v583 = vld [vmem:[#allocation10 + $0x428] sm:$0xff]
    %v584 = vld [vmem:[#allocation10 + $0x430] sm:$0xff]
    %v585 = vld [vmem:[#allocation10 + $0x438] sm:$0xff]
    %v586 = vld [vmem:[#allocation10 + $0x440] sm:$0xff]
    %v587 = vld [vmem:[#allocation10 + $0x448] sm:$0xff]
    %v588 = vld [vmem:[#allocation10 + $0x450] sm:$0xff]
    %v589 = vld [vmem:[#allocation10 + $0x458] sm:$0xff]
    %v590 = vld [vmem:[#allocation10 + $0x460] sm:$0xff]
    %v591 = vld [vmem:[#allocation10 + $0x468] sm:$0xff]
    %v592 = vld [vmem:[#allocation10 + $0x470] sm:$0xff]
    %v593 = vld [vmem:[#allocation10 + $0x478] sm:$0xff]
    %v594 = vld [vmem:[#allocation10 + $0x480] sm:$0xff]
    %v595 = vld [vmem:[#allocation10 + $0x488] sm:$0xff]
    %v596 = vld [vmem:[#allocation10 + $0x490] sm:$0xff]
    %v597 = vld [vmem:[#allocation10 + $0x498] sm:$0xff]
    %v598 = vld [vmem:[#allocation10 + $0x4a0] sm:$0xff]
    %v599 = vld [vmem:[#allocation10 + $0x4a8] sm:$0xff]
    %v600 = vld [vmem:[#allocation10 + $0x4b0] sm:$0xff]
    %v601 = vld [vmem:[#allocation10 + $0x4b8] sm:$0xff]
    %v602 = vld [vmem:[#allocation10 + $0x4c0] sm:$0xff]
    %v603 = vld [vmem:[#allocation10 + $0x4c8] sm:$0xff]
    %v604 = vld [vmem:[#allocation10 + $0x4d0] sm:$0xff]
    %v605 = vld [vmem:[#allocation10 + $0x4d8] sm:$0xff]
    %v606 = vld [vmem:[#allocation10 + $0x4e0] sm:$0xff]
    %v607 = vld [vmem:[#allocation10 + $0x4e8] sm:$0xff]
    %v608 = vld [vmem:[#allocation10 + $0x4f0] sm:$0xff]
    %v609 = vld [vmem:[#allocation10 + $0x4f8] sm:$0xff]
    %v610 = vld [vmem:[#allocation10 + $0x500] sm:$0xff]
    %v611 = vld [vmem:[#allocation10 + $0x508] sm:$0xff]
    %v612 = vld [vmem:[#allocation10 + $0x510] sm:$0xff]
    %v613 = vld [vmem:[#allocation10 + $0x518] sm:$0xff]
    %v614 = vld [vmem:[#allocation10 + $0x520] sm:$0xff]
    %v615 = vld [vmem:[#allocation10 + $0x528] sm:$0xff]
    %v616 = vld [vmem:[#allocation10 + $0x530] sm:$0xff]
    %v617 = vld [vmem:[#allocation10 + $0x538] sm:$0xff]
    %v618 = vld [vmem:[#allocation10 + $0x540] sm:$0xff]
    %v619 = vld [vmem:[#allocation10 + $0x548] sm:$0xff]
    %v620 = vld [vmem:[#allocation10 + $0x550] sm:$0xff]
    %v621 = vld [vmem:[#allocation10 + $0x558] sm:$0xff]
    %v622 = vld [vmem:[#allocation10 + $0x560] sm:$0xff]
    %v623 = vld [vmem:[#allocation10 + $0x568] sm:$0xff]
    %v624 = vld [vmem:[#allocation10 + $0x570] sm:$0xff]
    %v625 = vld [vmem:[#allocation10 + $0x578] sm:$0xff]
    %v626 = vld [vmem:[#allocation10 + $0x580] sm:$0xff]
    %v627 = vld [vmem:[#allocation10 + $0x588] sm:$0xff]
    %v628 = vld [vmem:[#allocation10 + $0x590] sm:$0xff]
    %v629 = vld [vmem:[#allocation10 + $0x598] sm:$0xff]
    %v630 = vld [vmem:[#allocation10 + $0x5a0] sm:$0xff]
    %v631 = vld [vmem:[#allocation10 + $0x5a8] sm:$0xff]
    %v632 = vld [vmem:[#allocation10 + $0x5b0] sm:$0xff]
    %v633 = vld [vmem:[#allocation10 + $0x5b8] sm:$0xff]
    %v634 = vld [vmem:[#allocation10 + $0x5c0] sm:$0xff]
    %v635 = vld [vmem:[#allocation10 + $0x5c8] sm:$0xff]
    %v636 = vld [vmem:[#allocation10 + $0x5d0] sm:$0xff]
    %v637 = vld [vmem:[#allocation10 + $0x5d8] sm:$0xff]
    %v638 = vld [vmem:[#allocation10 + $0x5e0] sm:$0xff]
    %v639 = vld [vmem:[#allocation10 + $0x5e8] sm:$0xff]
    %v640 = vld [vmem:[#allocation10 + $0x5f0] sm:$0xff]
    %v641 = vld [vmem:[#allocation10 + $0x5f8] sm:$0xff]
    %v642 = vld [vmem:[#allocation10 + $0x600] sm:$0xff]
    %v643 = vld [vmem:[#allocation10 + $0x608] sm:$0xff]
    %v644 = vld [vmem:[#allocation10 + $0x610] sm:$0xff]
    %v645 = vld [vmem:[#allocation10 + $0x618] sm:$0xff]
    %v646 = vld [vmem:[#allocation10 + $0x620] sm:$0xff]
    %v647 = vld [vmem:[#allocation10 + $0x628] sm:$0xff]
    %v648 = vld [vmem:[#allocation10 + $0x630] sm:$0xff]
    %v649 = vld [vmem:[#allocation10 + $0x638] sm:$0xff]
    %v650 = vld [vmem:[#allocation10 + $0x640] sm:$0xff]
    %v651 = vld [vmem:[#allocation10 + $0x648] sm:$0xff]
    %v652 = vld [vmem:[#allocation10 + $0x650] sm:$0xff]
    %v653 = vld [vmem:[#allocation10 + $0x658] sm:$0xff]
    %v654 = vld [vmem:[#allocation10 + $0x660] sm:$0xff]
    %v655 = vld [vmem:[#allocation10 + $0x668] sm:$0xff]
    %v656 = vld [vmem:[#allocation10 + $0x670] sm:$0xff]
    %v657 = vld [vmem:[#allocation10 + $0x678] sm:$0xff]
    %v658 = vld [vmem:[#allocation10 + $0x680] sm:$0xff]
    %v659 = vld [vmem:[#allocation10 + $0x688] sm:$0xff]
    %v660 = vld [vmem:[#allocation10 + $0x690] sm:$0xff]
    %v661 = vld [vmem:[#allocation10 + $0x698] sm:$0xff]
    %v662 = vld [vmem:[#allocation10 + $0x6a0] sm:$0xff]
    %v663 = vld [vmem:[#allocation10 + $0x6a8] sm:$0xff]
    %v664 = vld [vmem:[#allocation10 + $0x6b0] sm:$0xff]
    %v665 = vld [vmem:[#allocation10 + $0x6b8] sm:$0xff]
    %v666 = vld [vmem:[#allocation10 + $0x6c0] sm:$0xff]
    %v667 = vld [vmem:[#allocation10 + $0x6c8] sm:$0xff]
    %v668 = vld [vmem:[#allocation10 + $0x6d0] sm:$0xff]
    %v669 = vld [vmem:[#allocation10 + $0x6d8] sm:$0xff]
    %v670 = vld [vmem:[#allocation10 + $0x6e0] sm:$0xff]
    %v671 = vld [vmem:[#allocation10 + $0x6e8] sm:$0xff]
    %v672 = vld [vmem:[#allocation10 + $0x6f0] sm:$0xff]
    %v673 = vld [vmem:[#allocation10 + $0x6f8] sm:$0xff]
    %v674 = vld [vmem:[#allocation10 + $0x700] sm:$0xff]
    %v675 = vld [vmem:[#allocation10 + $0x708] sm:$0xff]
    %v676 = vld [vmem:[#allocation10 + $0x710] sm:$0xff]
    %v677 = vld [vmem:[#allocation10 + $0x718] sm:$0xff]
    %v678 = vld [vmem:[#allocation10 + $0x720] sm:$0xff]
    %v679 = vld [vmem:[#allocation10 + $0x728] sm:$0xff]
    %v680 = vld [vmem:[#allocation10 + $0x730] sm:$0xff]
    %v681 = vld [vmem:[#allocation10 + $0x738] sm:$0xff]
    %v682 = vld [vmem:[#allocation10 + $0x740] sm:$0xff]
    %v683 = vld [vmem:[#allocation10 + $0x748] sm:$0xff]
    %v684 = vld [vmem:[#allocation10 + $0x750] sm:$0xff]
    %v685 = vld [vmem:[#allocation10 + $0x758] sm:$0xff]
    %v686 = vld [vmem:[#allocation10 + $0x760] sm:$0xff]
    %v687 = vld [vmem:[#allocation10 + $0x768] sm:$0xff]
    %v688 = vld [vmem:[#allocation10 + $0x770] sm:$0xff]
    %v689 = vld [vmem:[#allocation10 + $0x778] sm:$0xff]
    %v690 = vld [vmem:[#allocation10 + $0x780] sm:$0xff]
    %v691 = vld [vmem:[#allocation10 + $0x788] sm:$0xff]
    %v692 = vld [vmem:[#allocation10 + $0x790] sm:$0xff]
    %v693 = vld [vmem:[#allocation10 + $0x798] sm:$0xff]
    %v694 = vld [vmem:[#allocation10 + $0x7a0] sm:$0xff]
    %v695 = vld [vmem:[#allocation10 + $0x7a8] sm:$0xff]
    %v696 = vld [vmem:[#allocation10 + $0x7b0] sm:$0xff]
    %v697 = vld [vmem:[#allocation10 + $0x7b8] sm:$0xff]
    %v698 = vld [vmem:[#allocation10 + $0x7c0] sm:$0xff]
    %v699 = vld [vmem:[#allocation10 + $0x7c8] sm:$0xff]
    %v700 = vld [vmem:[#allocation10 + $0x7d0] sm:$0xff]
    %v701 = vld [vmem:[#allocation10 + $0x7d8] sm:$0xff]
    %v702 = vld [vmem:[#allocation10 + $0x7e0] sm:$0xff]
    %v703 = vld [vmem:[#allocation10 + $0x7e8] sm:$0xff]
    %v704 = vld [vmem:[#allocation10 + $0x7f0] sm:$0xff]
    %v705 = vld [vmem:[#allocation10 + $0x7f8] sm:$0xff]
    %v706 = vld [vmem:[%s5] sm:$0x3]
    %v708 = vperm.slane %v706, 0
    %v709 = vperm.slane %v706, 1
    %712 = vmatpush.msra.mxu0 %v480
    %713 = vmatpush.msra.mxu0 %v478
    %714 = vmatpush.msra.mxu0 %v476
    %715 = vmatpush.msra.mxu0 %v474
    %716 = vmatpush.msra.mxu0 %v472
    %717 = vmatpush.msra.mxu0 %v470
    %718 = vmatpush.msra.mxu0 %v468
    %719 = vmatpush.msra.mxu0 %v466
    %720 = vmatpush.msra.mxu0 %v464
    %721 = vmatpush.msra.mxu0 %v462
    %722 = vmatpush.msra.mxu0 %v460
    %723 = vmatpush.msra.mxu0 %v458
    %724 = vmatpush.msra.mxu0 %v456
    %725 = vmatpush.msra.mxu0 %v454
    %726 = vmatpush.msra.mxu0 %v452
    %727 = vmatpush.msra.mxu0 %v450
    %728 = vmatmul.f32.gmra.mxu0 %v442
    %v729 = vpop.f32.mrf.mxu0
    %v730 = vadd.f32 %v708, %v729
    %731 = vdwg.mxu0
    %732 = vmatpush.msra.mxu0 %v512
    %733 = vmatpush.msra.mxu0 %v510
    %734 = vmatpush.msra.mxu0 %v508
    %735 = vmatpush.msra.mxu0 %v506
    %736 = vmatpush.msra.mxu0 %v504
    %737 = vmatpush.msra.mxu0 %v502
    %738 = vmatpush.msra.mxu0 %v500
    %739 = vmatpush.msra.mxu0 %v498
    %740 = vmatpush.msra.mxu0 %v496
    %741 = vmatpush.msra.mxu0 %v494
    %742 = vmatpush.msra.mxu0 %v492
    %743 = vmatpush.msra.mxu0 %v490
    %744 = vmatpush.msra.mxu0 %v488
    %745 = vmatpush.msra.mxu0 %v486
    %746 = vmatpush.msra.mxu0 %v484
    %747 = vmatpush.msra.mxu0 %v482
    %748 = vmatmul.f32.gmra.mxu0 %v443
    %v749 = vpop.f32.mrf.mxu0
    %v750 = vadd.f32 %v730, %v749
    %751 = vdwg.mxu0
    %752 = vmatpush.msra.mxu0 %v544
    %753 = vmatpush.msra.mxu0 %v542
    %754 = vmatpush.msra.mxu0 %v540
    %755 = vmatpush.msra.mxu0 %v538
    %756 = vmatpush.msra.mxu0 %v536
    %757 = vmatpush.msra.mxu0 %v534
    %758 = vmatpush.msra.mxu0 %v532
    %759 = vmatpush.msra.mxu0 %v530
    %760 = vmatpush.msra.mxu0 %v528
    %761 = vmatpush.msra.mxu0 %v526
    %762 = vmatpush.msra.mxu0 %v524
    %763 = vmatpush.msra.mxu0 %v522
    %764 = vmatpush.msra.mxu0 %v520
    %765 = vmatpush.msra.mxu0 %v518
    %766 = vmatpush.msra.mxu0 %v516
    %767 = vmatpush.msra.mxu0 %v514
    %768 = vmatmul.f32.gmra.mxu0 %v444
    %v769 = vpop.f32.mrf.mxu0
    %v770 = vadd.f32 %v750, %v769
    %771 = vdwg.mxu0
    %772 = vmatpush.msra.mxu0 %v576
    %773 = vmatpush.msra.mxu0 %v574
    %774 = vmatpush.msra.mxu0 %v572
    %775 = vmatpush.msra.mxu0 %v570
    %776 = vmatpush.msra.mxu0 %v568
    %777 = vmatpush.msra.mxu0 %v566
    %778 = vmatpush.msra.mxu0 %v564
    %779 = vmatpush.msra.mxu0 %v562
    %780 = vmatpush.msra.mxu0 %v560
    %781 = vmatpush.msra.mxu0 %v558
    %782 = vmatpush.msra.mxu0 %v556
    %783 = vmatpush.msra.mxu0 %v554
    %784 = vmatpush.msra.mxu0 %v552
    %785 = vmatpush.msra.mxu0 %v550
    %786 = vmatpush.msra.mxu0 %v548
    %787 = vmatpush.msra.mxu0 %v546
    %788 = vmatmul.f32.gmra.mxu0 %v445
    %v789 = vpop.f32.mrf.mxu0
    %v790 = vadd.f32 %v770, %v789
    %791 = vdwg.mxu0
    %792 = vmatpush.msra.mxu0 %v608
    %793 = vmatpush.msra.mxu0 %v606
    %794 = vmatpush.msra.mxu0 %v604
    %795 = vmatpush.msra.mxu0 %v602
    %796 = vmatpush.msra.mxu0 %v600
    %797 = vmatpush.msra.mxu0 %v598
    %798 = vmatpush.msra.mxu0 %v596
    %799 = vmatpush.msra.mxu0 %v594
    %800 = vmatpush.msra.mxu0 %v592
    %801 = vmatpush.msra.mxu0 %v590
    %802 = vmatpush.msra.mxu0 %v588
    %803 = vmatpush.msra.mxu0 %v586
    %804 = vmatpush.msra.mxu0 %v584
    %805 = vmatpush.msra.mxu0 %v582
    %806 = vmatpush.msra.mxu0 %v580
    %807 = vmatpush.msra.mxu0 %v578
    %808 = vmatmul.f32.gmra.mxu0 %v446
    %v809 = vpop.f32.mrf.mxu0
    %v810 = vadd.f32 %v790, %v809
    %811 = vdwg.mxu0
    %812 = vmatpush.msra.mxu0 %v640
    %813 = vmatpush.msra.mxu0 %v638
    %814 = vmatpush.msra.mxu0 %v636
    %815 = vmatpush.msra.mxu0 %v634
    %816 = vmatpush.msra.mxu0 %v632
    %817 = vmatpush.msra.mxu0 %v630
    %818 = vmatpush.msra.mxu0 %v628
    %819 = vmatpush.msra.mxu0 %v626
    %820 = vmatpush.msra.mxu0 %v624
    %821 = vmatpush.msra.mxu0 %v622
    %822 = vmatpush.msra.mxu0 %v620
    %823 = vmatpush.msra.mxu0 %v618
    %824 = vmatpush.msra.mxu0 %v616
    %825 = vmatpush.msra.mxu0 %v614
    %826 = vmatpush.msra.mxu0 %v612
    %827 = vmatpush.msra.mxu0 %v610
    %828 = vmatmul.f32.gmra.mxu0 %v447
    %v829 = vpop.f32.mrf.mxu0
    %v830 = vadd.f32 %v810, %v829
    %831 = vdwg.mxu0
    %832 = vmatpush.msra.mxu0 %v672
    %833 = vmatpush.msra.mxu0 %v670
    %834 = vmatpush.msra.mxu0 %v668
    %835 = vmatpush.msra.mxu0 %v666
    %836 = vmatpush.msra.mxu0 %v664
    %837 = vmatpush.msra.mxu0 %v662
    %838 = vmatpush.msra.mxu0 %v660
    %839 = vmatpush.msra.mxu0 %v658
    %840 = vmatpush.msra.mxu0 %v656
    %841 = vmatpush.msra.mxu0 %v654
    %842 = vmatpush.msra.mxu0 %v652
    %843 = vmatpush.msra.mxu0 %v650
    %844 = vmatpush.msra.mxu0 %v648
    %845 = vmatpush.msra.mxu0 %v646
    %846 = vmatpush.msra.mxu0 %v644
    %847 = vmatpush.msra.mxu0 %v642
    %848 = vmatmul.f32.gmra.mxu0 %v448
    %v849 = vpop.f32.mrf.mxu0
    %v850 = vadd.f32 %v830, %v849
    %851 = vdwg.mxu0
    %852 = vmatpush.msra.mxu0 %v704
    %853 = vmatpush.msra.mxu0 %v702
    %854 = vmatpush.msra.mxu0 %v700
    %855 = vmatpush.msra.mxu0 %v698
    %856 = vmatpush.msra.mxu0 %v696
    %857 = vmatpush.msra.mxu0 %v694
    %858 = vmatpush.msra.mxu0 %v692
    %859 = vmatpush.msra.mxu0 %v690
    %860 = vmatpush.msra.mxu0 %v688
    %861 = vmatpush.msra.mxu0 %v686
    %862 = vmatpush.msra.mxu0 %v684
    %863 = vmatpush.msra.mxu0 %v682
    %864 = vmatpush.msra.mxu0 %v680
    %865 = vmatpush.msra.mxu0 %v678
    %866 = vmatpush.msra.mxu0 %v676
    %867 = vmatpush.msra.mxu0 %v674
    %868 = vmatmul.f32.gmra.mxu0 %v449
    %v869 = vpop.f32.mrf.mxu0
    %v870 = vadd.f32 %v850, %v869
    %871 = vdwg.mxu0
    %872 = vmatpush.msra.mxu0 %v481
    %873 = vmatpush.msra.mxu0 %v479
    %874 = vmatpush.msra.mxu0 %v477
    %875 = vmatpush.msra.mxu0 %v475
    %876 = vmatpush.msra.mxu0 %v473
    %877 = vmatpush.msra.mxu0 %v471
    %878 = vmatpush.msra.mxu0 %v469
    %879 = vmatpush.msra.mxu0 %v467
    %880 = vmatpush.msra.mxu0 %v465
    %881 = vmatpush.msra.mxu0 %v463
    %882 = vmatpush.msra.mxu0 %v461
    %883 = vmatpush.msra.mxu0 %v459
    %884 = vmatpush.msra.mxu0 %v457
    %885 = vmatpush.msra.mxu0 %v455
    %886 = vmatpush.msra.mxu0 %v453
    %887 = vmatpush.msra.mxu0 %v451
    %888 = vmatmul.f32.gmra.mxu0 %v442
    %v889 = vpop.f32.mrf.mxu0
    %v890 = vadd.f32 %v709, %v889
    %891 = vdwg.mxu0
    %892 = vmatpush.msra.mxu0 %v513
    %893 = vmatpush.msra.mxu0 %v511
    %894 = vmatpush.msra.mxu0 %v509
    %895 = vmatpush.msra.mxu0 %v507
    %896 = vmatpush.msra.mxu0 %v505
    %897 = vmatpush.msra.mxu0 %v503
    %898 = vmatpush.msra.mxu0 %v501
    %899 = vmatpush.msra.mxu0 %v499
    %900 = vmatpush.msra.mxu0 %v497
    %901 = vmatpush.msra.mxu0 %v495
    %902 = vmatpush.msra.mxu0 %v493
    %903 = vmatpush.msra.mxu0 %v491
    %904 = vmatpush.msra.mxu0 %v489
    %905 = vmatpush.msra.mxu0 %v487
    %906 = vmatpush.msra.mxu0 %v485
    %907 = vmatpush.msra.mxu0 %v483
    %908 = vmatmul.f32.gmra.mxu0 %v443
    %v909 = vpop.f32.mrf.mxu0
    %v910 = vadd.f32 %v890, %v909
    %911 = vdwg.mxu0
    %912 = vmatpush.msra.mxu0 %v545
    %913 = vmatpush.msra.mxu0 %v543
    %914 = vmatpush.msra.mxu0 %v541
    %915 = vmatpush.msra.mxu0 %v539
    %916 = vmatpush.msra.mxu0 %v537
    %917 = vmatpush.msra.mxu0 %v535
    %918 = vmatpush.msra.mxu0 %v533
    %919 = vmatpush.msra.mxu0 %v531
    %920 = vmatpush.msra.mxu0 %v529
    %921 = vmatpush.msra.mxu0 %v527
    %922 = vmatpush.msra.mxu0 %v525
    %923 = vmatpush.msra.mxu0 %v523
    %924 = vmatpush.msra.mxu0 %v521
    %925 = vmatpush.msra.mxu0 %v519
    %926 = vmatpush.msra.mxu0 %v517
    %927 = vmatpush.msra.mxu0 %v515
    %928 = vmatmul.f32.gmra.mxu0 %v444
    %v929 = vpop.f32.mrf.mxu0
    %v930 = vadd.f32 %v910, %v929
    %931 = vdwg.mxu0
    %932 = vmatpush.msra.mxu0 %v577
    %933 = vmatpush.msra.mxu0 %v575
    %934 = vmatpush.msra.mxu0 %v573
    %935 = vmatpush.msra.mxu0 %v571
    %936 = vmatpush.msra.mxu0 %v569
    %937 = vmatpush.msra.mxu0 %v567
    %938 = vmatpush.msra.mxu0 %v565
    %939 = vmatpush.msra.mxu0 %v563
    %940 = vmatpush.msra.mxu0 %v561
    %941 = vmatpush.msra.mxu0 %v559
    %942 = vmatpush.msra.mxu0 %v557
    %943 = vmatpush.msra.mxu0 %v555
    %944 = vmatpush.msra.mxu0 %v553
    %945 = vmatpush.msra.mxu0 %v551
    %946 = vmatpush.msra.mxu0 %v549
    %947 = vmatpush.msra.mxu0 %v547
    %948 = vmatmul.f32.gmra.mxu0 %v445
    %v949 = vpop.f32.mrf.mxu0
    %v950 = vadd.f32 %v930, %v949
    %951 = vdwg.mxu0
    %952 = vmatpush.msra.mxu0 %v609
    %953 = vmatpush.msra.mxu0 %v607
    %954 = vmatpush.msra.mxu0 %v605
    %955 = vmatpush.msra.mxu0 %v603
    %956 = vmatpush.msra.mxu0 %v601
    %957 = vmatpush.msra.mxu0 %v599
    %958 = vmatpush.msra.mxu0 %v597
    %959 = vmatpush.msra.mxu0 %v595
    %960 = vmatpush.msra.mxu0 %v593
    %961 = vmatpush.msra.mxu0 %v591
    %962 = vmatpush.msra.mxu0 %v589
    %963 = vmatpush.msra.mxu0 %v587
    %964 = vmatpush.msra.mxu0 %v585
    %965 = vmatpush.msra.mxu0 %v583
    %966 = vmatpush.msra.mxu0 %v581
    %967 = vmatpush.msra.mxu0 %v579
    %968 = vmatmul.f32.gmra.mxu0 %v446
    %v969 = vpop.f32.mrf.mxu0
    %v970 = vadd.f32 %v950, %v969
    %971 = vdwg.mxu0
    %972 = vmatpush.msra.mxu0 %v641
    %973 = vmatpush.msra.mxu0 %v639
    %974 = vmatpush.msra.mxu0 %v637
    %975 = vmatpush.msra.mxu0 %v635
    %976 = vmatpush.msra.mxu0 %v633
    %977 = vmatpush.msra.mxu0 %v631
    %978 = vmatpush.msra.mxu0 %v629
    %979 = vmatpush.msra.mxu0 %v627
    %980 = vmatpush.msra.mxu0 %v625
    %981 = vmatpush.msra.mxu0 %v623
    %982 = vmatpush.msra.mxu0 %v621
    %983 = vmatpush.msra.mxu0 %v619
    %984 = vmatpush.msra.mxu0 %v617
    %985 = vmatpush.msra.mxu0 %v615
    %986 = vmatpush.msra.mxu0 %v613
    %987 = vmatpush.msra.mxu0 %v611
    %988 = vmatmul.f32.gmra.mxu0 %v447
    %v989 = vpop.f32.mrf.mxu0
    %v990 = vadd.f32 %v970, %v989
    %991 = vdwg.mxu0
    %992 = vmatpush.msra.mxu0 %v673
    %993 = vmatpush.msra.mxu0 %v671
    %994 = vmatpush.msra.mxu0 %v669
    %995 = vmatpush.msra.mxu0 %v667
    %996 = vmatpush.msra.mxu0 %v665
    %997 = vmatpush.msra.mxu0 %v663
    %998 = vmatpush.msra.mxu0 %v661
    %999 = vmatpush.msra.mxu0 %v659
    %1000 = vmatpush.msra.mxu0 %v657
    %1001 = vmatpush.msra.mxu0 %v655
    %1002 = vmatpush.msra.mxu0 %v653
    %1003 = vmatpush.msra.mxu0 %v651
    %1004 = vmatpush.msra.mxu0 %v649
    %1005 = vmatpush.msra.mxu0 %v647
    %1006 = vmatpush.msra.mxu0 %v645
    %1007 = vmatpush.msra.mxu0 %v643
    %1008 = vmatmul.f32.gmra.mxu0 %v448
    %v1009 = vpop.f32.mrf.mxu0
    %v1010 = vadd.f32 %v990, %v1009
    %1011 = vdwg.mxu0
    %1012 = vmatpush.msra.mxu0 %v705
    %1013 = vmatpush.msra.mxu0 %v703
    %1014 = vmatpush.msra.mxu0 %v701
    %1015 = vmatpush.msra.mxu0 %v699
    %1016 = vmatpush.msra.mxu0 %v697
    %1017 = vmatpush.msra.mxu0 %v695
    %1018 = vmatpush.msra.mxu0 %v693
    %1019 = vmatpush.msra.mxu0 %v691
    %1020 = vmatpush.msra.mxu0 %v689
    %1021 = vmatpush.msra.mxu0 %v687
    %1022 = vmatpush.msra.mxu0 %v685
    %1023 = vmatpush.msra.mxu0 %v683
    %1024 = vmatpush.msra.mxu0 %v681
    %1025 = vmatpush.msra.mxu0 %v679
    %1026 = vmatpush.msra.mxu0 %v677
    %1027 = vmatpush.msra.mxu0 %v675
    %1028 = vmatmul.f32.gmra.mxu0 %v449
    %v1029 = vpop.f32.mrf.mxu0
    %v1030 = vadd.f32 %v1010, %v1029
    %1031 = vdwg.mxu0
    %1032 = vst [vmem:[#allocation11] sm:$0xff] %v870
    %1033 = vst [vmem:[#allocation11 + $0x8] sm:$0xff] %v1030
    // Predicated region
    $region46: #{tpu_custom_call.1} parent=1 // pred_check
      _
    $region47: #{tpu_custom_call.1} parent=1 // pred_check_branch
      %1035 = sbr.rel (0) target = $region49
    $region48: #{tpu_custom_call.1} parent=1 // pred_region
      %1037 = vsyncadd [#allocation4], 0
      %s1039 = sshll.u32 [#allocation11], 4
      %s1040 = int_to_ptr.vmem [resolvable:$true] %s1039
      %s1041 = sshll.u32 %s6, 4
      %s1042 = int_to_ptr.hbm [resolvable:$true] %s1041
      %1044 = dma.vmem_to_hbm [thread:$0]  %s1040, 256, %s1042, [#allocation4]
    $region49: #{tpu_custom_call.1} parent=1 // pred_fallthru
      _
    // Predicated region
    $region50: #{tpu_custom_call.1} parent=1 // pred_check
      _
    $region51: #{tpu_custom_call.1} parent=1 // pred_check_branch
      %1046 = sbr.rel (0) target = $region53
    $region52: #{tpu_custom_call.1} parent=1 // pred_region
      %1048 = dma.done [#allocation4], 256
    $region53: #{tpu_custom_call.1} parent=1 // pred_fallthru
      _
    %1049 = vsyncpa [#allocation3], 1
    %1050 = vsyncpa [#allocation6], 1
    %1051 = vsyncpa [#allocation9], 1
    %1052 = vsyncpa [#allocation4], 1

</llo_original>
